<compile_context>
chip_gen: v7x
topology: tpu7x:2x2x1
jax: 0.10.0
libtpu: 0.0.40
codegen_flags: <defaults>
</compile_context>

<pallas_src>
import math

import jax
import jax.numpy as jnp
from jax import lax
from jax.experimental import pallas as pl
from jax.experimental.pallas import tpu as pltpu


# ----------------------------------------------------------------------------
# Fused Pallas kernel: GRU weight evolution + GCNConv propagation
# ----------------------------------------------------------------------------
def _fused_gru_gcn_kernel(xh_ref, wblk_ref, bcat_ref, a_ref, x_ref, bconv_ref,
                          wnew_ref, h_ref):
    """EvolveGCNH core.

    xh    : [C, 2C]  = [X_tilde | W_prev]   (pooled features | previous conv weight)
    wblk  : [6C, 2C] = block_diag(W_ih, W_hh)   (untransposed; contracted on dim 1)
    bcat  : [1, 6C]  = [b_ih | b_hh]
    a     : [N, N]   dense gcn-normalized adjacency, A[dst, src]
    x     : [N, C]   node features
    bconv : [1, C]   GCNConv bias
    wnew  : [C, C]   evolved conv weight (output)
    h     : [N, C]   GCN output          (output)
    """
    C = wnew_ref.shape[1]
    xh = xh_ref[...]                                   # [C, 2C]
    h_prev = xh[:, C:2 * C]                            # previous GCN weight = GRU hidden

    # ---- GRU step: one MXU contraction (K = 2C) instead of two K = C matmuls ----
    # g[:, :3C] = x_tilde @ W_ih^T ,  g[:, 3C:] = W_prev @ W_hh^T   (gate order r,z,n)
    g = lax.dot_general(xh, wblk_ref[...], (((1,), (1,)), ((), ())),
                        preferred_element_type=jnp.float32) + bcat_ref[...]
    gi = g[:, 0:3 * C]
    gh = g[:, 3 * C:6 * C]
    r = jax.nn.sigmoid(gi[:, 0:C] + gh[:, 0:C])
    z = jax.nn.sigmoid(gi[:, C:2 * C] + gh[:, C:2 * C])
    n = jnp.tanh(gi[:, 2 * C:3 * C] + r * gh[:, 2 * C:3 * C])
    w_new = (1.0 - z) * n + z * h_prev                 # stays in VMEM / vregs
    wnew_ref[...] = w_new

    # ---- GCNConv with the evolved weight: H = A_norm @ (X @ W_new^T) + bias ----
    xw = lax.dot_general(x_ref[...], w_new, (((1,), (1,)), ((), ())),
                         preferred_element_type=jnp.float32)        # [N, C]
    h_ref[...] = jnp.dot(a_ref[...], xw,
                         preferred_element_type=jnp.float32) + bconv_ref[...]


def _vmem_spec():
    # whole array resident in VMEM; no grid -> no double buffering of tiny tiles
    return pl.BlockSpec(memory_space=pltpu.MemorySpace.VMEM)


def fused_gru_gcn(xh, w_blk, b_cat, a_norm, x, b_conv):
    N, C = x.shape
    return pl.pallas_call(
        _fused_gru_gcn_kernel,
        out_shape=(jax.ShapeDtypeStruct((C, C), jnp.float32),   # W_new
                   jax.ShapeDtypeStruct((N, C), jnp.float32)),  # H
        in_specs=[_vmem_spec()] * 6,
        out_specs=(_vmem_spec(), _vmem_spec()),
    )(xh, w_blk, b_cat, a_norm, x, b_conv)


# ----------------------------------------------------------------------------
# Plain-JAX glue (score / top-k / adjacency build; fused by XLA, not kernel work)
# ----------------------------------------------------------------------------
def build_norm_adj(edge_index, num_nodes, edge_weight=None, improved=False):
    """gcn_norm: add self-loops, symmetric D^{-1/2} A D^{-1/2}; dense [dst, src]."""
    row, col = edge_index[0], edge_index[1]            # row = src, col = dst
    if edge_weight is None:
        ew = jnp.ones(row.shape[0], dtype=jnp.float32)
    else:
        ew = edge_weight.astype(jnp.float32)
    loop = jnp.arange(num_nodes, dtype=row.dtype)
    fill = 2.0 if improved else 1.0
    row = jnp.concatenate([row, loop])
    col = jnp.concatenate([col, loop])
    ew = jnp.concatenate([ew, jnp.full((num_nodes,), fill, jnp.float32)])
    deg = jnp.zeros((num_nodes,), jnp.float32).at[col].add(ew)
    dinv = jnp.where(deg > 0, lax.rsqrt(deg), 0.0)
    norm = dinv[row] * ew * dinv[col]
    return jnp.zeros((num_nodes, num_nodes), jnp.float32).at[col, row].add(norm)


def precompute_static(params, edge_index, num_nodes, edge_weight=None, improved=False):
    """Everything that is constant across timesteps (hoisted out of the hot path)."""
    C = params["W_conv"].shape[0]
    zeros = jnp.zeros_like(params["w_ih"])              # [3C, C]
    w_blk = jnp.concatenate(
        [jnp.concatenate([params["w_ih"], zeros], axis=1),
         jnp.concatenate([zeros, params["w_hh"]], axis=1)], axis=0)   # [6C, 2C]
    b_cat = jnp.concatenate([params["b_ih"], params["b_hh"]]).reshape(1, 6 * C)
    return {
        "A": build_norm_adj(edge_index, num_nodes, edge_weight, improved),
        "w_blk": w_blk.astype(jnp.float32),
        "b_cat": b_cat.astype(jnp.float32),
        "p_unit": (params["p"] / jnp.linalg.norm(params["p"])).astype(jnp.float32),
        "b_conv": params["b_conv"].reshape(1, C).astype(jnp.float32),
    }


def evolve_gcn_h_forward(X, W_conv, static):
    """One EvolveGCNH step: TopK pool -> GRU weight evolution -> GCNConv.

    Returns (H, W_new); feed W_new back as W_conv on the next timestep.
    """
    N, C = X.shape
    # TopKPooling: score = tanh((X @ p)/||p||); keep top-k nodes (k = ceil(ratio*N) = C),
    # scale kept rows by their score.
    assert N >= C, "TopK ratio = C/num_nodes requires at least C nodes"
    score = jnp.tanh(X @ static["p_unit"])                      # [N]
    # TODO(synk): jax.lax.top_k tie-breaking may differ from torch.topk on exact ties.
    top_vals, perm = lax.top_k(score, C)
    x_tilde = X[perm] * top_vals[:, None]                       # [C, C]

    # Pack the GRU LHS in the wrapper (fuses with the top_k gather inside XLA).
    xh = jnp.concatenate([x_tilde, W_conv.astype(jnp.float32)], axis=1)   # [C, 2C]

    W_new, H = fused_gru_gcn(xh, static["w_blk"], static["b_cat"],
                             static["A"], X.astype(jnp.float32), static["b_conv"])
    return H, W_new


# ----------------------------------------------------------------------------
# Main
# ----------------------------------------------------------------------------
if __name__ == "__main__":
    NUM_NODES = 64      # cfg.dataset.num_nodes
    C = 32              # in_channels (= out_channels)
    NUM_EDGES = 256

    key = jax.random.PRNGKey(0)
    ks = jax.random.split(key, 10)
    std = 1.0 / math.sqrt(C)

    params = {
        # TopKPooling projection vector
        "p": jax.random.uniform(ks[0], (C,), jnp.float32, -std, std),
        # GRU parameters (input_size = hidden_size = C), gate order [r, z, n]
        "w_ih": jax.random.uniform(ks[1], (3 * C, C), jnp.float32, -std, std),
        "w_hh": jax.random.uniform(ks[2], (3 * C, C), jnp.float32, -std, std),
        "b_ih": jax.random.uniform(ks[3], (3 * C,), jnp.float32, -std, std),
        "b_hh": jax.random.uniform(ks[4], (3 * C,), jnp.float32, -std, std),
        # GCNConv linear weight (uniform(-1/sqrt(C), 1/sqrt(C)) as in __init__), zero bias
        "W_conv": jax.random.uniform(ks[5], (C, C), jnp.float32, -std, std),
        "b_conv": jnp.zeros((C,), jnp.float32),
    }

    # Deterministic inputs
    X = jax.random.normal(ks[6], (NUM_NODES, C), jnp.float32)
    src = jax.random.randint(ks[7], (NUM_EDGES,), 0, NUM_NODES, dtype=jnp.int32)
    dst = jax.random.randint(ks[8], (NUM_EDGES,), 0, NUM_NODES, dtype=jnp.int32)
    edge_index = jnp.stack([src, dst], axis=0)

    # Per-graph / per-parameter constants, computed once (outside the temporal loop).
    static = precompute_static(params, edge_index, NUM_NODES)

    fwd = jax.jit(evolve_gcn_h_forward)
    H, W_new = fwd(X, params["W_conv"], static)
    jax.block_until_ready(H)
    jax.block_until_ready(W_new)

    assert H.shape == (NUM_NODES, C) and W_new.shape == (C, C)
    assert bool(jnp.all(jnp.isfinite(H))) and bool(jnp.all(jnp.isfinite(W_new)))
    print("KERNEL_OK")
</pallas_src>

<mosaic_0001>
module attributes {stable_mosaic.version = 11 : i64} {
  func.func @_fused_gru_gcn_kernel(%arg0: memref<32x64xf32, #tpu.memory_space<vmem>>, %arg1: memref<192x64xf32, #tpu.memory_space<vmem>>, %arg2: memref<1x192xf32, #tpu.memory_space<vmem>>, %arg3: memref<64x64xf32, #tpu.memory_space<vmem>>, %arg4: memref<64x32xf32, #tpu.memory_space<vmem>>, %arg5: memref<1x32xf32, #tpu.memory_space<vmem>>, %arg6: memref<32x32xf32, #tpu.memory_space<vmem>>, %arg7: memref<64x32xf32, #tpu.memory_space<vmem>>) attributes {dimension_semantics = [], scalar_prefetch = 0 : i64, scratch_operands = 0 : i64, tpu.core_type = #tpu.core_type<tc>} {
    %c0 = arith.constant 0 : index
    %c0_0 = arith.constant 0 : index
    %0 = vector.load %arg0[%c0, %c0_0] : memref<32x64xf32, #tpu.memory_space<vmem>>, vector<32x64xf32>
    %1 = vector.extract_strided_slice %0 {offsets = [0, 32], sizes = [32, 32], strides = [1, 1]} : vector<32x64xf32> to vector<32x32xf32>
    %c0_1 = arith.constant 0 : index
    %c0_2 = arith.constant 0 : index
    %2 = vector.load %arg1[%c0_1, %c0_2] : memref<192x64xf32, #tpu.memory_space<vmem>>, vector<192x64xf32>
    %cst = arith.constant dense<0.000000e+00> : vector<32x192xf32>
    %3 = tpu.matmul %0, %2, %cst {dimension_numbers = #tpu.dot_dimension_numbers<[1], [1], [0], [0], [0, 0, 1, 0], [], []>} : vector<32x64xf32>, vector<192x64xf32>, vector<32x192xf32> -> vector<32x192xf32>
    %c0_3 = arith.constant 0 : index
    %c0_4 = arith.constant 0 : index
    %4 = vector.load %arg2[%c0_3, %c0_4] : memref<1x192xf32, #tpu.memory_space<vmem>>, vector<1x192xf32>
    %5 = vector.broadcast %4 : vector<1x192xf32> to vector<32x192xf32>
    %6 = arith.addf %3, %5 : vector<32x192xf32>
    %7 = vector.extract_strided_slice %6 {offsets = [0, 0], sizes = [32, 96], strides = [1, 1]} : vector<32x192xf32> to vector<32x96xf32>
    %8 = vector.extract_strided_slice %6 {offsets = [0, 96], sizes = [32, 96], strides = [1, 1]} : vector<32x192xf32> to vector<32x96xf32>
    %9 = vector.extract_strided_slice %7 {offsets = [0, 0], sizes = [32, 32], strides = [1, 1]} : vector<32x96xf32> to vector<32x32xf32>
    %10 = vector.extract_strided_slice %8 {offsets = [0, 0], sizes = [32, 32], strides = [1, 1]} : vector<32x96xf32> to vector<32x32xf32>
    %11 = arith.addf %9, %10 : vector<32x32xf32>
    %12 = arith.negf %11 : vector<32x32xf32>
    %13 = math.exp %12 : vector<32x32xf32>
    %cst_5 = arith.constant 1.000000e+00 : f32
    %14 = vector.broadcast %cst_5 : f32 to vector<32x32xf32>
    %15 = arith.addf %14, %13 : vector<32x32xf32>
    %16 = arith.divf %14, %15 : vector<32x32xf32>
    %17 = vector.extract_strided_slice %7 {offsets = [0, 32], sizes = [32, 32], strides = [1, 1]} : vector<32x96xf32> to vector<32x32xf32>
    %18 = vector.extract_strided_slice %8 {offsets = [0, 32], sizes = [32, 32], strides = [1, 1]} : vector<32x96xf32> to vector<32x32xf32>
    %19 = arith.addf %17, %18 : vector<32x32xf32>
    %20 = arith.negf %19 : vector<32x32xf32>
    %21 = math.exp %20 : vector<32x32xf32>
    %cst_6 = arith.constant 1.000000e+00 : f32
    %22 = vector.broadcast %cst_6 : f32 to vector<32x32xf32>
    %23 = arith.addf %22, %21 : vector<32x32xf32>
    %24 = arith.divf %22, %23 : vector<32x32xf32>
    %25 = vector.extract_strided_slice %7 {offsets = [0, 64], sizes = [32, 32], strides = [1, 1]} : vector<32x96xf32> to vector<32x32xf32>
    %26 = vector.extract_strided_slice %8 {offsets = [0, 64], sizes = [32, 32], strides = [1, 1]} : vector<32x96xf32> to vector<32x32xf32>
    %27 = arith.mulf %16, %26 : vector<32x32xf32>
    %28 = arith.addf %25, %27 : vector<32x32xf32>
    %29 = math.tanh %28 : vector<32x32xf32>
    %cst_7 = arith.constant 1.000000e+00 : f32
    %30 = vector.broadcast %cst_7 : f32 to vector<32x32xf32>
    %31 = arith.subf %30, %24 : vector<32x32xf32>
    %32 = arith.mulf %31, %29 : vector<32x32xf32>
    %33 = arith.mulf %24, %1 : vector<32x32xf32>
    %34 = arith.addf %32, %33 : vector<32x32xf32>
    %c0_8 = arith.constant 0 : index
    %c0_9 = arith.constant 0 : index
    %35 = vector.load %arg6[%c0_8, %c0_9] : memref<32x32xf32, #tpu.memory_space<vmem>>, vector<32x32xf32>
    tpu.vector_store %arg6[%c0_8, %c0_9], %34 {strides = array<i32>} : memref<32x32xf32, #tpu.memory_space<vmem>>, vector<32x32xf32>,
    %c0_10 = arith.constant 0 : index
    %c0_11 = arith.constant 0 : index
    %36 = vector.load %arg4[%c0_10, %c0_11] : memref<64x32xf32, #tpu.memory_space<vmem>>, vector<64x32xf32>
    %cst_12 = arith.constant dense<0.000000e+00> : vector<64x32xf32>
    %37 = tpu.matmul %36, %34, %cst_12 {dimension_numbers = #tpu.dot_dimension_numbers<[1], [1], [0], [0], [0, 0, 1, 0], [], []>} : vector<64x32xf32>, vector<32x32xf32>, vector<64x32xf32> -> vector<64x32xf32>
    %c0_13 = arith.constant 0 : index
    %c0_14 = arith.constant 0 : index
    %38 = vector.load %arg3[%c0_13, %c0_14] : memref<64x64xf32, #tpu.memory_space<vmem>>, vector<64x64xf32>
    %cst_15 = arith.constant dense<0.000000e+00> : vector<64x32xf32>
    %39 = tpu.matmul %38, %37, %cst_15 {dimension_numbers = #tpu.dot_dimension_numbers<[1], [0], [0], [1], [0, 0, 1, 1], [], []>} : vector<64x64xf32>, vector<64x32xf32>, vector<64x32xf32> -> vector<64x32xf32>
    %c0_16 = arith.constant 0 : index
    %c0_17 = arith.constant 0 : index
    %40 = vector.load %arg5[%c0_16, %c0_17] : memref<1x32xf32, #tpu.memory_space<vmem>>, vector<1x32xf32>
    %41 = vector.broadcast %40 : vector<1x32xf32> to vector<64x32xf32>
    %42 = arith.addf %39, %41 : vector<64x32xf32>
    %c0_18 = arith.constant 0 : index
    %c0_19 = arith.constant 0 : index
    %43 = vector.load %arg7[%c0_18, %c0_19] : memref<64x32xf32, #tpu.memory_space<vmem>>, vector<64x32xf32>
    tpu.vector_store %arg7[%c0_18, %c0_19], %42 {strides = array<i32>} : memref<64x32xf32, #tpu.memory_space<vmem>>, vector<64x32xf32>,
    return
  }
}

</mosaic_0001>

<llo_original>
// kernel: evolve_gcn_h_forward.1
$region0: #{evolve_gcn_h_forward.1}
  #allocation0 [shape = 'u32[]', space=smem, size = 0x4, offset = 0x4, fixed_abs, tag = 'smem constant byte address 0x4 - core index']
  #allocation1 [shape = 'u32[144,128]{1,0:T(1,128)}', space=vmem, size = 0x12000, scoped, tag = 'internal scratch']
  %s0 = inlined_call_operand.vmem [shape: f32[32,64], index: 0, kind: input, shape index: {}]
  %s1 = inlined_call_operand.vmem [shape: f32[192,64], index: 1, kind: input, shape index: {}]
  %s2 = inlined_call_operand.vmem [shape: f32[1,192], index: 2, kind: input, shape index: {}]
  %s3 = inlined_call_operand.vmem [shape: f32[64,64], index: 3, kind: input, shape index: {}]
  %s4 = inlined_call_operand.vmem [shape: f32[64,32], index: 4, kind: input, shape index: {}]
  %s5 = inlined_call_operand.vmem [shape: f32[1,32], index: 5, kind: input, shape index: {}]
  %s6 = inlined_call_operand.hbm [shape: f32[32,32], index: 6, kind: output, shape index: {0}]
  %s7 = inlined_call_operand.vmem [shape: f32[64,32], index: 7, kind: output, shape index: {1}]
  %8 = xla_tuple %s6, %s7
  %s9 = sld [smem:[#allocation0]]
  $region42: #{evolve_gcn_h_forward.1} parent=0
    _
  %s11 = ssub.s32 1, %s9
  %s12 = scalar_select 0, %s11, %s9
  $region1: #{evolve_gcn_h_forward.1} parent=0
    #allocation2 [shape = 'u8[16384]{0}', space=vmem, size = 0x4000, scoped, tag = 'output window, operand 0, single buffered']
    #allocation3 [shape = 's32[1]{0}', space=sflag, size = 0x4, scoped, tag = 'scoped memory for evolve_gcn_h_forward.1']
    %13 = vsyncpa [#allocation3], 0
    // Predicated region
    $region2: #{evolve_gcn_h_forward.1} parent=1 // pred_check
      _
    $region3: #{evolve_gcn_h_forward.1} parent=1 // pred_check_branch
      %15 = sbr.rel (0) target = $region5
    $region4: #{evolve_gcn_h_forward.1} parent=1 // pred_region
      _
    $region5: #{evolve_gcn_h_forward.1} parent=1 // pred_fallthru
      _
    // Predicated region
    $region6: #{evolve_gcn_h_forward.1} parent=1 // pred_check
      _
    $region7: #{evolve_gcn_h_forward.1} parent=1 // pred_check_branch
      %17 = sbr.rel (0) target = $region9
    $region8: #{evolve_gcn_h_forward.1} parent=1 // pred_region
      _
    $region9: #{evolve_gcn_h_forward.1} parent=1 // pred_fallthru
      _
    // Predicated region
    $region10: #{evolve_gcn_h_forward.1} parent=1 // pred_check
      _
    $region11: #{evolve_gcn_h_forward.1} parent=1 // pred_check_branch
      %19 = sbr.rel (0) target = $region13
    $region12: #{evolve_gcn_h_forward.1} parent=1 // pred_region
      _
    $region13: #{evolve_gcn_h_forward.1} parent=1 // pred_fallthru
      _
    // Predicated region
    $region14: #{evolve_gcn_h_forward.1} parent=1 // pred_check
      _
    $region15: #{evolve_gcn_h_forward.1} parent=1 // pred_check_branch
      %21 = sbr.rel (0) target = $region17
    $region16: #{evolve_gcn_h_forward.1} parent=1 // pred_region
      _
    $region17: #{evolve_gcn_h_forward.1} parent=1 // pred_fallthru
      _
    // Predicated region
    $region18: #{evolve_gcn_h_forward.1} parent=1 // pred_check
      _
    $region19: #{evolve_gcn_h_forward.1} parent=1 // pred_check_branch
      %23 = sbr.rel (0) target = $region21
    $region20: #{evolve_gcn_h_forward.1} parent=1 // pred_region
      _
    $region21: #{evolve_gcn_h_forward.1} parent=1 // pred_fallthru
      _
    // Predicated region
    $region22: #{evolve_gcn_h_forward.1} parent=1 // pred_check
      _
    $region23: #{evolve_gcn_h_forward.1} parent=1 // pred_check_branch
      %25 = sbr.rel (0) target = $region25
    $region24: #{evolve_gcn_h_forward.1} parent=1 // pred_region
      _
    $region25: #{evolve_gcn_h_forward.1} parent=1 // pred_fallthru
      _
    %v26 = vld [vmem:[%s0] sm:$0xff]
    %v27 = vld [vmem:[%s0 + $0x8] sm:$0xff]
    %v28 = vld [vmem:[%s0 + $0x10] sm:$0xff]
    %v29 = vld [vmem:[%s0 + $0x18] sm:$0xff]
    %v30 = vld [vmem:[%s1] sm:$0xff]
    %v31 = vld [vmem:[%s1 + $0x8] sm:$0xff]
    %v32 = vld [vmem:[%s1 + $0x10] sm:$0xff]
    %v33 = vld [vmem:[%s1 + $0x18] sm:$0xff]
    %v34 = vld [vmem:[%s1 + $0x20] sm:$0xff]
    %v35 = vld [vmem:[%s1 + $0x28] sm:$0xff]
    %v36 = vld [vmem:[%s1 + $0x30] sm:$0xff]
    %v37 = vld [vmem:[%s1 + $0x38] sm:$0xff]
    %v38 = vld [vmem:[%s1 + $0x40] sm:$0xff]
    %v39 = vld [vmem:[%s1 + $0x48] sm:$0xff]
    %v40 = vld [vmem:[%s1 + $0x50] sm:$0xff]
    %v41 = vld [vmem:[%s1 + $0x58] sm:$0xff]
    %v42 = vld [vmem:[%s1 + $0x60] sm:$0xff]
    %v43 = vld [vmem:[%s1 + $0x68] sm:$0xff]
    %v44 = vld [vmem:[%s1 + $0x70] sm:$0xff]
    %v45 = vld [vmem:[%s1 + $0x78] sm:$0xff]
    %v46 = vld [vmem:[%s1 + $0x80] sm:$0xff]
    %v47 = vld [vmem:[%s1 + $0x88] sm:$0xff]
    %v48 = vld [vmem:[%s1 + $0x90] sm:$0xff]
    %v49 = vld [vmem:[%s1 + $0x98] sm:$0xff]
    %v50 = vld [vmem:[%s1 + $0xa0] sm:$0xff]
    %v51 = vld [vmem:[%s1 + $0xa8] sm:$0xff]
    %v52 = vld [vmem:[%s1 + $0xb0] sm:$0xff]
    %v53 = vld [vmem:[%s1 + $0xb8] sm:$0xff]
    %v54 = vld [vmem:[%s2] sm:$0x3]
    %v56 = vlaneseq
    %v57 = vshrl.u32 %v56, 7
    %v58 = vsub.s32 0, %v57
    %v59 = vrot.slane %v54, %v58
    %v60 = vlaneseq
    %v61 = vshrl.u32 %v60, 7
    %v62 = vsub.s32 1, %v61
    %v63 = vrot.slane %v54, %v62
    %vm66 = vcmask 523264
    %v68 = vsel %vm66, %v26, 0
    %v71 = vsel %vm66, %v27, 0
    %v74 = vsel %vm66, %v28, 0
    %v77 = vsel %vm66, %v29, 0
    %v80 = vsel %vm66, %v30, 0
    %v83 = vsel %vm66, %v31, 0
    %v86 = vsel %vm66, %v32, 0
    %v89 = vsel %vm66, %v33, 0
    %v92 = vsel %vm66, %v34, 0
    %v95 = vsel %vm66, %v35, 0
    %v98 = vsel %vm66, %v36, 0
    %v101 = vsel %vm66, %v37, 0
    %v104 = vsel %vm66, %v38, 0
    %v107 = vsel %vm66, %v39, 0
    %v110 = vsel %vm66, %v40, 0
    %v113 = vsel %vm66, %v41, 0
    %v116 = vsel %vm66, %v42, 0
    %v119 = vsel %vm66, %v43, 0
    %v122 = vsel %vm66, %v44, 0
    %v125 = vsel %vm66, %v45, 0
    %v128 = vsel %vm66, %v46, 0
    %v131 = vsel %vm66, %v47, 0
    %v134 = vsel %vm66, %v48, 0
    %v137 = vsel %vm66, %v49, 0
    %v140 = vsel %vm66, %v50, 0
    %v143 = vsel %vm66, %v51, 0
    %v146 = vsel %vm66, %v52, 0
    %v149 = vsel %vm66, %v53, 0
    %151 = vmatprep.subr.mxu0 0.0
    %152 = vmatpush1.xpose.msra.mxu0 %v80
    %153 = vmatprep.subr.mxu0 0.0
    %154 = vmatpush1.xpose.msra.mxu0 %v83
    %155 = vmatprep.subr.mxu0 0.0
    %156 = vmatpush1.xpose.msra.mxu0 %v86
    %157 = vmatprep.subr.mxu0 0.0
    %158 = vmatpush1.xpose.msra.mxu0 %v89
    %159 = vmatprep.subr.mxu0 0.0
    %160 = vmatpush1.xpose.msra.mxu0 %v92
    %161 = vmatprep.subr.mxu0 0.0
    %162 = vmatpush1.xpose.msra.mxu0 %v95
    %163 = vmatprep.subr.mxu0 0.0
    %164 = vmatpush1.xpose.msra.mxu0 %v98
    %165 = vmatprep.subr.mxu0 0.0
    %166 = vmatpush1.xpose.msra.mxu0 %v101
    %167 = vmatprep.subr.mxu0 0.0
    %168 = vmatpush1.xpose.msra.mxu0 %v104
    %169 = vmatprep.subr.mxu0 0.0
    %170 = vmatpush1.xpose.msra.mxu0 %v107
    %171 = vmatprep.subr.mxu0 0.0
    %172 = vmatpush1.xpose.msra.mxu0 %v110
    %173 = vmatprep.subr.mxu0 0.0
    %174 = vmatpush1.xpose.msra.mxu0 %v113
    %175 = vmatprep.subr.mxu0 0.0
    %176 = vmatpush1.xpose.msra.mxu0 %v116
    %177 = vmatprep.subr.mxu0 0.0
    %178 = vmatpush1.xpose.msra.mxu0 %v119
    %179 = vmatprep.subr.mxu0 0.0
    %180 = vmatpush1.xpose.msra.mxu0 %v122
    %181 = vmatprep.subr.mxu0 0.0
    %182 = vmatpush1.xpose.msra.mxu0 %v125
    %183 = vmatprep.subr.mxu0 0.0
    %184 = vmatpush1.xpose.msra.mxu0 %v128
    %185 = vmatprep.subr.mxu0 0.0
    %186 = vmatpush1.xpose.msra.mxu0 %v131
    %187 = vmatprep.subr.mxu0 0.0
    %188 = vmatpush1.xpose.msra.mxu0 %v134
    %189 = vmatprep.subr.mxu0 0.0
    %190 = vmatpush1.xpose.msra.mxu0 %v137
    %191 = vmatprep.subr.mxu0 0.0
    %192 = vmatpush1.xpose.msra.mxu0 %v140
    %193 = vmatprep.subr.mxu0 0.0
    %194 = vmatpush1.xpose.msra.mxu0 %v143
    %195 = vmatprep.subr.mxu0 0.0
    %196 = vmatpush1.xpose.msra.mxu0 %v146
    %197 = vmatprep.subr.mxu0 0.0
    %198 = vmatpush1.xpose.msra.mxu0 %v149
    %199 = vmatprep.subr.mxu0 0.0
    %200 = vmatpush1.xpose.msra.mxu0 0.0
    %201 = vmatprep.subr.mxu0 0.0
    %202 = vmatpush1.xpose.msra.mxu0 0.0
    %203 = vmatprep.subr.mxu0 0.0
    %204 = vmatpush1.xpose.msra.mxu0 0.0
    %205 = vmatprep.subr.mxu0 0.0
    %206 = vmatpush1.xpose.msra.mxu0 0.0
    %207 = vmatprep.subr.mxu0 0.0
    %208 = vmatpush1.xpose.msra.mxu0 0.0
    %209 = vmatprep.subr.mxu0 0.0
    %210 = vmatpush1.xpose.msra.mxu0 0.0
    %211 = vmatprep.subr.mxu0 0.0
    %212 = vmatpush1.xpose.msra.mxu0 0.0
    %213 = vmatprep.subr.mxu0 0.0
    %214 = vmatpush1.xpose.msra.mxu0 0.0
    %215 = vmatprep.mubr.f32.mxu0 0.0
    %216 = vmatmul.mubr.f32.gmra.mrb[0].mxu0 %v68
    %v217 = vpop.f32.mrb[0].mxu0
    %v218 = vadd.f32 %v59, %v217
    %v219 = vpop.f32.mrb[0].mxu0
    %v220 = vadd.f32 %v63, %v219
    %221 = vmatprep.mubr.f32.mxu0 0.0
    %222 = vmatmul.mubr.f32.gmra.mrb[0].mxu0 %v71
    %v223 = vpop.f32.mrb[0].mxu0
    %v224 = vadd.f32 %v59, %v223
    %v225 = vpop.f32.mrb[0].mxu0
    %v226 = vadd.f32 %v63, %v225
    %227 = vmatprep.mubr.f32.mxu0 0.0
    %228 = vmatmul.mubr.f32.gmra.mrb[0].mxu0 %v74
    %v229 = vpop.f32.mrb[0].mxu0
    %v230 = vadd.f32 %v59, %v229
    %v231 = vpop.f32.mrb[0].mxu0
    %v232 = vadd.f32 %v63, %v231
    %233 = vmatprep.mubr.f32.mxu0 0.0
    %234 = vmatmul.mubr.f32.gmra.mrb[0].mxu0 %v77
    %v235 = vpop.f32.mrb[0].mxu0
    %v236 = vadd.f32 %v59, %v235
    %v237 = vpop.f32.mrb[0].mxu0
    %v238 = vadd.f32 %v63, %v237
    %239 = vdwg.mxu0
    %244 = vrot.lane.b32.xlu0 %v218, 32
    %v245 = vpop.permute.xlu0 %244
    %246 = vrot.lane.b32.xlu0 %v224, 32
    %v247 = vpop.permute.xlu0 %246
    %248 = vrot.lane.b32.xlu0 %v230, 32
    %v249 = vpop.permute.xlu0 %248
    %250 = vrot.lane.b32.xlu0 %v236, 32
    %v251 = vpop.permute.xlu0 %250
    %v256 = vadd.f32 %v218, %v245
    %v257 = vadd.f32 %v224, %v247
    %v258 = vadd.f32 %v230, %v249
    %v259 = vadd.f32 %v236, %v251
    %v260 = vxor.u32 %v256, 2147483648
    %v261 = vxor.u32 %v257, 2147483648
    %v262 = vxor.u32 %v258, 2147483648
    %v263 = vxor.u32 %v259, 2147483648
    %v264 = vmul.f32 %v260, 1.442695
    %v265 = vpow.pop %v264
    %v266 = vmul.f32 %v261, 1.442695
    %v267 = vpow.pop %v266
    %v268 = vmul.f32 %v262, 1.442695
    %v269 = vpow.pop %v268
    %v270 = vmul.f32 %v263, 1.442695
    %v271 = vpow.pop %v270
    %v272 = vadd.f32 %v265, 1.0
    %v273 = vadd.f32 %v267, 1.0
    %v274 = vadd.f32 %v269, 1.0
    %v275 = vadd.f32 %v271, 1.0
    %v276 = vrcp.pop %v272
    %v277 = vmul.f32 1.0, %v276
    %v278 = vrcp.pop %v273
    %v279 = vmul.f32 1.0, %v278
    %v280 = vrcp.pop %v274
    %v281 = vmul.f32 1.0, %v280
    %v282 = vrcp.pop %v275
    %v283 = vmul.f32 1.0, %v282
    %288 = vrot.lane.b32.xlu0 %v220, 32
    %v289 = vpop.permute.xlu0 %288
    %290 = vrot.lane.b32.xlu0 %v226, 32
    %v291 = vpop.permute.xlu0 %290
    %292 = vrot.lane.b32.xlu0 %v232, 32
    %v293 = vpop.permute.xlu0 %292
    %294 = vrot.lane.b32.xlu0 %v238, 32
    %v295 = vpop.permute.xlu0 %294
    %v300 = vadd.f32 %v218, %v289
    %v301 = vadd.f32 %v224, %v291
    %v302 = vadd.f32 %v230, %v293
    %v303 = vadd.f32 %v236, %v295
    %v304 = vxor.u32 %v300, 2147483648
    %v305 = vxor.u32 %v301, 2147483648
    %v306 = vxor.u32 %v302, 2147483648
    %v307 = vxor.u32 %v303, 2147483648
    %v308 = vmul.f32 %v304, 1.442695
    %v309 = vpow.pop %v308
    %v310 = vmul.f32 %v305, 1.442695
    %v311 = vpow.pop %v310
    %v312 = vmul.f32 %v306, 1.442695
    %v313 = vpow.pop %v312
    %v314 = vmul.f32 %v307, 1.442695
    %v315 = vpow.pop %v314
    %v316 = vadd.f32 %v309, 1.0
    %v317 = vadd.f32 %v311, 1.0
    %v318 = vadd.f32 %v313, 1.0
    %v319 = vadd.f32 %v315, 1.0
    %v320 = vrcp.pop %v316
    %v321 = vmul.f32 1.0, %v320
    %v322 = vrcp.pop %v317
    %v323 = vmul.f32 1.0, %v322
    %v324 = vrcp.pop %v318
    %v325 = vmul.f32 1.0, %v324
    %v326 = vrcp.pop %v319
    %v327 = vmul.f32 1.0, %v326
    %328 = vrot.lane.b32.xlu0 %v220, 96
    %v329 = vpop.permute.xlu0 %328
    %330 = vrot.lane.b32.xlu0 %v226, 96
    %v331 = vpop.permute.xlu0 %330
    %332 = vrot.lane.b32.xlu0 %v232, 96
    %v333 = vpop.permute.xlu0 %332
    %334 = vrot.lane.b32.xlu0 %v238, 96
    %v335 = vpop.permute.xlu0 %334
    %v340 = vmul.f32 %v277, %v329
    %v341 = vmul.f32 %v279, %v331
    %v342 = vmul.f32 %v281, %v333
    %v343 = vmul.f32 %v283, %v335
    %348 = vrot.lane.b32.xlu0 %v340, 64
    %v349 = vpop.permute.xlu0 %348
    %350 = vrot.lane.b32.xlu0 %v341, 64
    %v351 = vpop.permute.xlu0 %350
    %352 = vrot.lane.b32.xlu0 %v342, 64
    %v353 = vpop.permute.xlu0 %352
    %354 = vrot.lane.b32.xlu0 %v343, 64
    %v355 = vpop.permute.xlu0 %354
    %v360 = vadd.f32 %v218, %v349
    %v361 = vadd.f32 %v224, %v351
    %v362 = vadd.f32 %v230, %v353
    %v363 = vadd.f32 %v236, %v355
    %v364 = vtanh.pop %v360
    %v365 = vtanh.pop %v361
    %v366 = vtanh.pop %v362
    %v367 = vtanh.pop %v363
    %v368 = vsub.f32 1.0, %v321
    %v369 = vsub.f32 1.0, %v323
    %v370 = vsub.f32 1.0, %v325
    %v371 = vsub.f32 1.0, %v327
    %376 = vrot.lane.b32.xlu0 %v364, 96
    %v377 = vpop.permute.xlu0 %376
    %378 = vrot.lane.b32.xlu0 %v365, 96
    %v379 = vpop.permute.xlu0 %378
    %380 = vrot.lane.b32.xlu0 %v366, 96
    %v381 = vpop.permute.xlu0 %380
    %382 = vrot.lane.b32.xlu0 %v367, 96
    %v383 = vpop.permute.xlu0 %382
    %v388 = vmul.f32 %v368, %v377
    %v389 = vmul.f32 %v369, %v379
    %v390 = vmul.f32 %v370, %v381
    %v391 = vmul.f32 %v371, %v383
    %v392 = vmul.f32 %v321, %v26
    %v393 = vmul.f32 %v323, %v27
    %v394 = vmul.f32 %v325, %v28
    %v395 = vmul.f32 %v327, %v29
    %v396 = vadd.f32 %v388, %v392
    %v397 = vadd.f32 %v389, %v393
    %v398 = vadd.f32 %v390, %v394
    %v399 = vadd.f32 %v391, %v395
    %404 = vrot.lane.b32.xlu0 %v396, 96
    %v405 = vpop.permute.xlu0 %404
    %406 = vrot.lane.b32.xlu0 %v397, 96
    %v407 = vpop.permute.xlu0 %406
    %408 = vrot.lane.b32.xlu0 %v398, 96
    %v409 = vpop.permute.xlu0 %408
    %410 = vrot.lane.b32.xlu0 %v399, 96
    %v411 = vpop.permute.xlu0 %410
    %vm416 = vcmask 261120
    %417 = vst.msk [vmem:[#allocation2] sm:$0xff] %vm416, %v405
    %418 = vst.msk [vmem:[#allocation2 + $0x8] sm:$0xff] %vm416, %v407
    %419 = vst.msk [vmem:[#allocation2 + $0x10] sm:$0xff] %vm416, %v409
    %420 = vst.msk [vmem:[#allocation2 + $0x18] sm:$0xff] %vm416, %v411
    %v421 = vld [vmem:[%s4] sm:$0xff]
    %v422 = vld [vmem:[%s4 + $0x8] sm:$0xff]
    %v423 = vld [vmem:[%s4 + $0x10] sm:$0xff]
    %v424 = vld [vmem:[%s4 + $0x18] sm:$0xff]
    %v425 = vld [vmem:[%s4 + $0x20] sm:$0xff]
    %v426 = vld [vmem:[%s4 + $0x28] sm:$0xff]
    %v427 = vld [vmem:[%s4 + $0x30] sm:$0xff]
    %v428 = vld [vmem:[%s4 + $0x38] sm:$0xff]
    %v430 = vsel %vm416, %v421, 0
    %v433 = vsel %vm416, %v422, 0
    %v436 = vsel %vm416, %v423, 0
    %v439 = vsel %vm416, %v424, 0
    %v442 = vsel %vm416, %v425, 0
    %v445 = vsel %vm416, %v426, 0
    %v448 = vsel %vm416, %v427, 0
    %v451 = vsel %vm416, %v428, 0
    %v453 = vsel %vm416, %v405, 0
    %v455 = vsel %vm416, %v407, 0
    %v457 = vsel %vm416, %v409, 0
    %v459 = vsel %vm416, %v411, 0
    %461 = vmatprep.subr.mxu0 0.0
    %462 = vmatpush1.xpose.msra.mxu0 %v453
    %463 = vmatprep.subr.mxu0 0.0
    %464 = vmatpush1.xpose.msra.mxu0 %v455
    %465 = vmatprep.subr.mxu0 0.0
    %466 = vmatpush1.xpose.msra.mxu0 %v457
    %467 = vmatprep.subr.mxu0 0.0
    %468 = vmatpush1.xpose.msra.mxu0 %v459
    %469 = vmatprep.subr.mxu0 0.0
    %470 = vmatpush1.xpose.msra.mxu0 0.0
    %471 = vmatprep.subr.mxu0 0.0
    %472 = vmatpush1.xpose.msra.mxu0 0.0
    %473 = vmatprep.subr.mxu0 0.0
    %474 = vmatpush1.xpose.msra.mxu0 0.0
    %475 = vmatprep.subr.mxu0 0.0
    %476 = vmatpush1.xpose.msra.mxu0 0.0
    %477 = vmatprep.subr.mxu0 0.0
    %478 = vmatpush1.xpose.msra.mxu0 0.0
    %479 = vmatprep.subr.mxu0 0.0
    %480 = vmatpush1.xpose.msra.mxu0 0.0
    %481 = vmatprep.subr.mxu0 0.0
    %482 = vmatpush1.xpose.msra.mxu0 0.0
    %483 = vmatprep.subr.mxu0 0.0
    %484 = vmatpush1.xpose.msra.mxu0 0.0
    %485 = vmatprep.subr.mxu0 0.0
    %486 = vmatpush1.xpose.msra.mxu0 0.0
    %487 = vmatprep.subr.mxu0 0.0
    %488 = vmatpush1.xpose.msra.mxu0 0.0
    %489 = vmatprep.subr.mxu0 0.0
    %490 = vmatpush1.xpose.msra.mxu0 0.0
    %491 = vmatprep.subr.mxu0 0.0
    %492 = vmatpush1.xpose.msra.mxu0 0.0
    %493 = vmatprep.subr.mxu0 0.0
    %494 = vmatpush1.xpose.msra.mxu0 0.0
    %495 = vmatprep.subr.mxu0 0.0
    %496 = vmatpush1.xpose.msra.mxu0 0.0
    %497 = vmatprep.subr.mxu0 0.0
    %498 = vmatpush1.xpose.msra.mxu0 0.0
    %499 = vmatprep.subr.mxu0 0.0
    %500 = vmatpush1.xpose.msra.mxu0 0.0
    %501 = vmatprep.subr.mxu0 0.0
    %502 = vmatpush1.xpose.msra.mxu0 0.0
    %503 = vmatprep.subr.mxu0 0.0
    %504 = vmatpush1.xpose.msra.mxu0 0.0
    %505 = vmatprep.subr.mxu0 0.0
    %506 = vmatpush1.xpose.msra.mxu0 0.0
    %507 = vmatprep.subr.mxu0 0.0
    %508 = vmatpush1.xpose.msra.mxu0 0.0
    %509 = vmatprep.subr.mxu0 0.0
    %510 = vmatpush1.xpose.msra.mxu0 0.0
    %511 = vmatprep.subr.mxu0 0.0
    %512 = vmatpush1.xpose.msra.mxu0 0.0
    %513 = vmatprep.subr.mxu0 0.0
    %514 = vmatpush1.xpose.msra.mxu0 0.0
    %515 = vmatprep.subr.mxu0 0.0
    %516 = vmatpush1.xpose.msra.mxu0 0.0
    %517 = vmatprep.subr.mxu0 0.0
    %518 = vmatpush1.xpose.msra.mxu0 0.0
    %519 = vmatprep.subr.mxu0 0.0
    %520 = vmatpush1.xpose.msra.mxu0 0.0
    %521 = vmatprep.subr.mxu0 0.0
    %522 = vmatpush1.xpose.msra.mxu0 0.0
    %523 = vmatprep.subr.mxu0 0.0
    %524 = vmatpush1.xpose.msra.mxu0 0.0
    %525 = vmatprep.mubr.f32.mxu0 0.0
    %526 = vmatmul.mubr.f32.gmra.mrb[0].mxu0 %v430
    %v527 = vpop.f32.mrb[0].mxu0
    %v528 = vadd.f32 0.0, %v527
    %v529 = vpop.f32.mrb[0].mxu0
    %530 = vmatprep.mubr.f32.mxu0 0.0
    %531 = vmatmul.mubr.f32.gmra.mrb[0].mxu0 %v433
    %v532 = vpop.f32.mrb[0].mxu0
    %v533 = vadd.f32 0.0, %v532
    %v534 = vpop.f32.mrb[0].mxu0
    %535 = vmatprep.mubr.f32.mxu0 0.0
    %536 = vmatmul.mubr.f32.gmra.mrb[0].mxu0 %v436
    %v537 = vpop.f32.mrb[0].mxu0
    %v538 = vadd.f32 0.0, %v537
    %v539 = vpop.f32.mrb[0].mxu0
    %540 = vmatprep.mubr.f32.mxu0 0.0
    %541 = vmatmul.mubr.f32.gmra.mrb[0].mxu0 %v439
    %v542 = vpop.f32.mrb[0].mxu0
    %v543 = vadd.f32 0.0, %v542
    %v544 = vpop.f32.mrb[0].mxu0
    %545 = vmatprep.mubr.f32.mxu0 0.0
    %546 = vmatmul.mubr.f32.gmra.mrb[0].mxu0 %v442
    %v547 = vpop.f32.mrb[0].mxu0
    %v548 = vadd.f32 0.0, %v547
    %v549 = vpop.f32.mrb[0].mxu0
    %550 = vmatprep.mubr.f32.mxu0 0.0
    %551 = vmatmul.mubr.f32.gmra.mrb[0].mxu0 %v445
    %v552 = vpop.f32.mrb[0].mxu0
    %v553 = vadd.f32 0.0, %v552
    %v554 = vpop.f32.mrb[0].mxu0
    %555 = vmatprep.mubr.f32.mxu0 0.0
    %556 = vmatmul.mubr.f32.gmra.mrb[0].mxu0 %v448
    %v557 = vpop.f32.mrb[0].mxu0
    %v558 = vadd.f32 0.0, %v557
    %v559 = vpop.f32.mrb[0].mxu0
    %560 = vmatprep.mubr.f32.mxu0 0.0
    %561 = vmatmul.mubr.f32.gmra.mrb[0].mxu0 %v451
    %v562 = vpop.f32.mrb[0].mxu0
    %v563 = vadd.f32 0.0, %v562
    %v564 = vpop.f32.mrb[0].mxu0
    %565 = vdwg.mxu0
    %v566 = vld [vmem:[%s3] sm:$0xff]
    %v567 = vld [vmem:[%s3 + $0x8] sm:$0xff]
    %v568 = vld [vmem:[%s3 + $0x10] sm:$0xff]
    %v569 = vld [vmem:[%s3 + $0x18] sm:$0xff]
    %v570 = vld [vmem:[%s3 + $0x20] sm:$0xff]
    %v571 = vld [vmem:[%s3 + $0x28] sm:$0xff]
    %v572 = vld [vmem:[%s3 + $0x30] sm:$0xff]
    %v573 = vld [vmem:[%s3 + $0x38] sm:$0xff]
    %v574 = vld [vmem:[%s5] sm:$0x1]
    %v576 = vlaneseq
    %v577 = vshrl.u32 %v576, 7
    %v578 = vsub.s32 0, %v577
    %v579 = vrot.slane %v574, %v578
    %v582 = vsel %vm66, %v566, 0
    %v585 = vsel %vm66, %v567, 0
    %v588 = vsel %vm66, %v568, 0
    %v591 = vsel %vm66, %v569, 0
    %v594 = vsel %vm66, %v570, 0
    %v597 = vsel %vm66, %v571, 0
    %v600 = vsel %vm66, %v572, 0
    %v603 = vsel %vm66, %v573, 0
    %605 = vmatprep.subr.mxu0 0.0
    %606 = vmatpush1.msra.mxu0 %v528
    %607 = vmatprep.subr.mxu0 0.0
    %608 = vmatpush1.msra.mxu0 %v533
    %609 = vmatprep.subr.mxu0 0.0
    %610 = vmatpush1.msra.mxu0 %v538
    %611 = vmatprep.subr.mxu0 0.0
    %612 = vmatpush1.msra.mxu0 %v543
    %613 = vmatprep.subr.mxu0 0.0
    %614 = vmatpush1.msra.mxu0 %v548
    %615 = vmatprep.subr.mxu0 0.0
    %616 = vmatpush1.msra.mxu0 %v553
    %617 = vmatprep.subr.mxu0 0.0
    %618 = vmatpush1.msra.mxu0 %v558
    %619 = vmatprep.subr.mxu0 0.0
    %620 = vmatpush1.msra.mxu0 %v563
    %621 = vmatprep.subr.mxu0 0.0
    %622 = vmatpush1.msra.mxu0 0.0
    %623 = vmatprep.subr.mxu0 0.0
    %624 = vmatpush1.msra.mxu0 0.0
    %625 = vmatprep.subr.mxu0 0.0
    %626 = vmatpush1.msra.mxu0 0.0
    %627 = vmatprep.subr.mxu0 0.0
    %628 = vmatpush1.msra.mxu0 0.0
    %629 = vmatprep.subr.mxu0 0.0
    %630 = vmatpush1.msra.mxu0 0.0
    %631 = vmatprep.subr.mxu0 0.0
    %632 = vmatpush1.msra.mxu0 0.0
    %633 = vmatprep.subr.mxu0 0.0
    %634 = vmatpush1.msra.mxu0 0.0
    %635 = vmatprep.subr.mxu0 0.0
    %636 = vmatpush1.msra.mxu0 0.0
    %637 = vmatprep.subr.mxu0 0.0
    %638 = vmatpush1.msra.mxu0 0.0
    %639 = vmatprep.subr.mxu0 0.0
    %640 = vmatpush1.msra.mxu0 0.0
    %641 = vmatprep.subr.mxu0 0.0
    %642 = vmatpush1.msra.mxu0 0.0
    %643 = vmatprep.subr.mxu0 0.0
    %644 = vmatpush1.msra.mxu0 0.0
    %645 = vmatprep.subr.mxu0 0.0
    %646 = vmatpush1.msra.mxu0 0.0
    %647 = vmatprep.subr.mxu0 0.0
    %648 = vmatpush1.msra.mxu0 0.0
    %649 = vmatprep.subr.mxu0 0.0
    %650 = vmatpush1.msra.mxu0 0.0
    %651 = vmatprep.subr.mxu0 0.0
    %652 = vmatpush1.msra.mxu0 0.0
    %653 = vmatprep.subr.mxu0 0.0
    %654 = vmatpush1.msra.mxu0 0.0
    %655 = vmatprep.subr.mxu0 0.0
    %656 = vmatpush1.msra.mxu0 0.0
    %657 = vmatprep.subr.mxu0 0.0
    %658 = vmatpush1.msra.mxu0 0.0
    %659 = vmatprep.subr.mxu0 0.0
    %660 = vmatpush1.msra.mxu0 0.0
    %661 = vmatprep.subr.mxu0 0.0
    %662 = vmatpush1.msra.mxu0 0.0
    %663 = vmatprep.subr.mxu0 0.0
    %664 = vmatpush1.msra.mxu0 0.0
    %665 = vmatprep.subr.mxu0 0.0
    %666 = vmatpush1.msra.mxu0 0.0
    %667 = vmatprep.subr.mxu0 0.0
    %668 = vmatpush1.msra.mxu0 0.0
    %669 = vmatprep.mubr.f32.mxu0 0.0
    %670 = vmatmul.mubr.f32.gmra.mrb[0].mxu0 %v582
    %v671 = vpop.f32.mrb[0].mxu0
    %v672 = vadd.f32 %v579, %v671
    %v673 = vpop.f32.mrb[0].mxu0
    %674 = vmatprep.mubr.f32.mxu0 0.0
    %675 = vmatmul.mubr.f32.gmra.mrb[0].mxu0 %v585
    %v676 = vpop.f32.mrb[0].mxu0
    %v677 = vadd.f32 %v579, %v676
    %v678 = vpop.f32.mrb[0].mxu0
    %679 = vmatprep.mubr.f32.mxu0 0.0
    %680 = vmatmul.mubr.f32.gmra.mrb[0].mxu0 %v588
    %v681 = vpop.f32.mrb[0].mxu0
    %v682 = vadd.f32 %v579, %v681
    %v683 = vpop.f32.mrb[0].mxu0
    %684 = vmatprep.mubr.f32.mxu0 0.0
    %685 = vmatmul.mubr.f32.gmra.mrb[0].mxu0 %v591
    %v686 = vpop.f32.mrb[0].mxu0
    %v687 = vadd.f32 %v579, %v686
    %v688 = vpop.f32.mrb[0].mxu0
    %689 = vmatprep.mubr.f32.mxu0 0.0
    %690 = vmatmul.mubr.f32.gmra.mrb[0].mxu0 %v594
    %v691 = vpop.f32.mrb[0].mxu0
    %v692 = vadd.f32 %v579, %v691
    %v693 = vpop.f32.mrb[0].mxu0
    %694 = vmatprep.mubr.f32.mxu0 0.0
    %695 = vmatmul.mubr.f32.gmra.mrb[0].mxu0 %v597
    %v696 = vpop.f32.mrb[0].mxu0
    %v697 = vadd.f32 %v579, %v696
    %v698 = vpop.f32.mrb[0].mxu0
    %699 = vmatprep.mubr.f32.mxu0 0.0
    %700 = vmatmul.mubr.f32.gmra.mrb[0].mxu0 %v600
    %v701 = vpop.f32.mrb[0].mxu0
    %v702 = vadd.f32 %v579, %v701
    %v703 = vpop.f32.mrb[0].mxu0
    %704 = vmatprep.mubr.f32.mxu0 0.0
    %705 = vmatmul.mubr.f32.gmra.mrb[0].mxu0 %v603
    %v706 = vpop.f32.mrb[0].mxu0
    %v707 = vadd.f32 %v579, %v706
    %v708 = vpop.f32.mrb[0].mxu0
    %709 = vdwg.mxu0
    %710 = vst.msk [vmem:[%s7] sm:$0xff] %vm416, %v672
    %711 = vst.msk [vmem:[%s7 + $0x8] sm:$0xff] %vm416, %v677
    %712 = vst.msk [vmem:[%s7 + $0x10] sm:$0xff] %vm416, %v682
    %713 = vst.msk [vmem:[%s7 + $0x18] sm:$0xff] %vm416, %v687
    %714 = vst.msk [vmem:[%s7 + $0x20] sm:$0xff] %vm416, %v692
    %715 = vst.msk [vmem:[%s7 + $0x28] sm:$0xff] %vm416, %v697
    %716 = vst.msk [vmem:[%s7 + $0x30] sm:$0xff] %vm416, %v702
    %717 = vst.msk [vmem:[%s7 + $0x38] sm:$0xff] %vm416, %v707
    // Predicated region
    $region26: #{evolve_gcn_h_forward.1} parent=1 // pred_check
      _
    $region27: #{evolve_gcn_h_forward.1} parent=1 // pred_check_branch
      %719 = sbr.rel (0) target = $region29
    $region28: #{evolve_gcn_h_forward.1} parent=1 // pred_region
      %s721 = ssub.s32 512, 512
      %722 = vsyncadd [#allocation3], %s721
      %s723 = sshll.u32 [#allocation2], 4
      %s724 = int_to_ptr.vmem [resolvable:$true] %s723
      %729 = dma.vmem_to_hbm [thread:$0]  %s724, 512, %s6, [#allocation3], 128, 128, 8
    $region29: #{evolve_gcn_h_forward.1} parent=1 // pred_fallthru
      _
    // Predicated region
    $region30: #{evolve_gcn_h_forward.1} parent=1 // pred_check
      _
    $region31: #{evolve_gcn_h_forward.1} parent=1 // pred_check_branch
      %731 = sbr.rel (0) target = $region33
    $region32: #{evolve_gcn_h_forward.1} parent=1 // pred_region
      _
    $region33: #{evolve_gcn_h_forward.1} parent=1 // pred_fallthru
      _
    // Predicated region
    $region34: #{evolve_gcn_h_forward.1} parent=1 // pred_check
      _
    $region35: #{evolve_gcn_h_forward.1} parent=1 // pred_check_branch
      %733 = sbr.rel (0) target = $region37
    $region36: #{evolve_gcn_h_forward.1} parent=1 // pred_region
      %734 = dma.done [#allocation3], 512
    $region37: #{evolve_gcn_h_forward.1} parent=1 // pred_fallthru
      _
    // Predicated region
    $region38: #{evolve_gcn_h_forward.1} parent=1 // pred_check
      _
    $region39: #{evolve_gcn_h_forward.1} parent=1 // pred_check_branch
      %736 = sbr.rel (0) target = $region41
    $region40: #{evolve_gcn_h_forward.1} parent=1 // pred_region
      _
    $region41: #{evolve_gcn_h_forward.1} parent=1 // pred_fallthru
      _
    %737 = vsyncpa [#allocation3], 1

</llo_original>
